<compile_context>
chip_gen: v5e
topology: v5e:2x2
jax: 0.10.0
libtpu: 0.0.40
codegen_flags: <defaults>
</compile_context>

<pallas_src>
import math

import jax
import jax.numpy as jnp
from jax.experimental import pallas as pl
from jax.experimental.pallas import tpu as pltpu


# ----------------------------------------------------------------------------
# helpers
# ----------------------------------------------------------------------------
def _vmem_budget_bytes():
    """Per-core VMEM budget with ~25% headroom (v7x: 64 MiB phys -> ~48 MiB)."""
    try:
        cap = int(pltpu.get_tpu_info().vmem_capacity_bytes)
    except Exception:
        cap = 64 * 2 ** 20          # conservative: v7x per-TensorCore VMEM
    return (cap * 3) // 4


def _divisors(n):
    return [t for t in range(1, n + 1) if n % t == 0]


def _dft_factors(N, l):
    """Forward/inverse real-DFT factors restricted to the l kept modes."""
    n = jnp.arange(N, dtype=jnp.float32)[:, None]                  # (N, 1)
    m = jnp.arange(l, dtype=jnp.float32)[None, :]                  # (1, l)
    ang = 2.0 * math.pi * n * m / float(N)                         # (N, l)
    cosm, sinm = jnp.cos(ang), jnp.sin(ang)                        # (N, l)
    # irfft weights: w_m = 1 for DC and (if kept) Nyquist, else 2; scaled 1/N.
    wgt = jnp.where((jnp.arange(l) == 0) |
                    ((N % 2 == 0) & (jnp.arange(l) == N // 2)),
                    1.0, 2.0).astype(jnp.float32) / float(N)       # (l,)
    ic = wgt[:, None] * cosm.T                                     # (l, N) * Yr
    isn = -wgt[:, None] * sinm.T                                   # (l, N) * Yi
    return cosm, sinm, ic, isn


# ----------------------------------------------------------------------------
# Path A: composed operator (small D*N) — one lane-dense matmul per grid step
# ----------------------------------------------------------------------------
def _composed_kernel(x_ref, k_ref, o_ref):
    o_ref[...] = jnp.dot(x_ref[...], k_ref[...],
                         preferred_element_type=jnp.float32).astype(o_ref.dtype)


def _build_composed_operator(weights_r, weights_i, N, D, l):
    """K (N*D, N*D) with out_flat = x_flat @ K, rows/cols flattened (n, d)."""
    cosm, sinm, ic, isn = _dft_factors(N, l)
    Wr = weights_r[:, :, :l]                                       # (D_in, D_out, l)
    Wi = weights_i[:, :, :l]
    # out[b, p, o] = sum_{n,i,m} x[b, n, i] *
    #   [ (C[n,m] Wr[i,o,m] + S[n,m] Wi[i,o,m]) * ic[m,p]
    #   + (C[n,m] Wi[i,o,m] - S[n,m] Wr[i,o,m]) * isn[m,p] ]
    K4 = (jnp.einsum('nm,iom,mp->nipo', cosm, Wr, ic)
          + jnp.einsum('nm,iom,mp->nipo', sinm, Wi, ic)
          + jnp.einsum('nm,iom,mp->nipo', cosm, Wi, isn)
          - jnp.einsum('nm,iom,mp->nipo', sinm, Wr, isn))          # (N, D, N, D)
    return K4.reshape(N * D, N * D).astype(jnp.float32)


def _composed_forward(x, weights_r, weights_i, l):
    B, N, c, k = x.shape
    D = c * k
    ND = N * D
    x_flat = x.reshape(B, ND)                     # free; matches torch .view order
    K = _build_composed_operator(weights_r, weights_i, N, D, l)

    budget = _vmem_budget_bytes()

    # Batch tile: sublane dim must be a multiple of 8 or the full batch dim.
    tb_cands = [t for t in _divisors(B)
                if (t % 8 == 0 or t == B) and 16 * t * ND <= budget // 2]
    TB = max(tb_cands) if tb_cands else B

    # Column tile of K: lane-dense (multiple of 128) and sized so the total
    # grid has >= 2 parallel steps (v7x has 2 TensorCores).
    kb_cands = [t for t in _divisors(ND)
                if t % 128 == 0 and 8 * ND * t <= budget // 2]
    if kb_cands:
        multi = [t for t in kb_cands if (B // TB) * (ND // t) >= 2]
        TC = max(multi) if multi else max(kb_cands)
    else:
        TC = ND
    grid = (B // TB, ND // TC)

    need = 4 * (2 * TB * ND + 2 * ND * TC + 2 * TB * TC)
    vmem_limit = int(min(budget, max(8 * 2 ** 20, 2 * need)))

    flops = 2 * B * ND * ND
    bytes_accessed = 4 * (2 * B * ND + ND * ND * max(1, B // TB))

    out_flat = pl.pallas_call(
        _composed_kernel,
        out_shape=jax.ShapeDtypeStruct((B, ND), jnp.float32),
        grid=grid,
        in_specs=[
            pl.BlockSpec((TB, ND), lambda b, j: (b, 0)),
            pl.BlockSpec((ND, TC), lambda b, j: (0, j)),
        ],
        out_specs=pl.BlockSpec((TB, TC), lambda b, j: (b, j)),
        compiler_params=pltpu.CompilerParams(
            dimension_semantics=("parallel", "parallel"),
            vmem_limit_bytes=vmem_limit),
        cost_estimate=pl.CostEstimate(
            flops=flops, transcendentals=0, bytes_accessed=bytes_accessed),
    )(x_flat, K)

    return out_flat.reshape(B, N, c, k)


# ----------------------------------------------------------------------------
# Path B: factored spectral path (large D*N)
# ----------------------------------------------------------------------------
def _make_factored_kernel(TB, D, l):
    l2 = 2 * l

    def kernel(x_ref, ffwd_ref, wcat_ref, finv_ref, o_ref):
        x = x_ref[...]                                            # (TB*D, N)
        # Forward real DFT restricted to l modes, [Re | Im] fused -> one matmul.
        spec = jnp.dot(x, ffwd_ref[...],
                       preferred_element_type=jnp.float32)        # (TB*D, 2l)
        # Mode-major layout for the per-mode channel mixing.
        # TODO(synk): for production shapes fold this relayout (and the one
        # before the inverse DFT) into the constant-operand layouts and
        # mode-tile wcat over a second grid axis so it fits v7x VMEM.
        spec_m = spec.T.reshape(l2, TB, D)                        # (2l, TB, D)
        # Per-mode complex channel mixing as one mode-batched MXU matmul.
        p = jnp.einsum('mbi,mio->mbo', spec_m, wcat_ref[...],
                       preferred_element_type=jnp.float32)        # (2l, TB, 2D)
        y = p[:l] + p[l:]                                         # (l, TB, 2D) = [Yr|Yi]
        ys = jnp.concatenate([y[:, :, :D], y[:, :, D:]], axis=0)  # (2l, TB, D)
        yk = ys.reshape(l2, TB * D).T                             # (TB*D, 2l)
        # Inverse real DFT (high modes implicitly zero) -> one matmul.
        out = jnp.dot(yk, finv_ref[...],
                      preferred_element_type=jnp.float32)         # (TB*D, N)
        o_ref[...] = out.astype(o_ref.dtype)

    return kernel


def _factored_forward(x, weights_r, weights_i, l):
    B, N, c, k = x.shape
    D = c * k
    l2 = 2 * l

    # Layout glue (HBM): (B, N, c, k) -> (B*D, N); rows = (batch, channel).
    x_flat = jnp.transpose(x.reshape(B, N, D), (0, 2, 1)).reshape(B * D, N)

    cosm, sinm, ic, isn = _dft_factors(N, l)
    ffwd = jnp.concatenate([cosm, -sinm], axis=1)                  # (N, 2l)
    finv = jnp.concatenate([ic, isn], axis=0)                      # (2l, N)

    # Block-complex mixing weights (2l, D, 2D):
    #   rows m <  l (real spectrum) multiply [ Wr | Wi ]
    #   rows m >= l (imag spectrum) multiply [ -Wi | Wr ]
    wr_m = jnp.transpose(weights_r[:, :, :l], (2, 0, 1))           # (l, D, D)
    wi_m = jnp.transpose(weights_i[:, :, :l], (2, 0, 1))
    wcat = jnp.concatenate(
        [jnp.concatenate([wr_m, wi_m], axis=-1),
         jnp.concatenate([-wi_m, wr_m], axis=-1)], axis=0)         # (2l, D, 2D)

    budget = _vmem_budget_bytes()
    const_bytes = 4 * (N * l2 + l2 * N + l2 * D * 2 * D)           # single-buffered

    def _fits(tb):
        act = 4 * 2 * (2 * tb * D * N)                   # x/out blocks, 2 buffers
        interm = 4 * (3 * l2 * tb * D + l2 * tb * 2 * D)  # spec/spec_m/ys + p
        return const_bytes + act + interm <= budget

    cands = [t for t in _divisors(B) if ((t * D) % 8 == 0 or t == B)]
    fit = [t for t in cands if _fits(t)] or cands[:1]
    TB = max(fit)
    if B // TB < 2:                      # prefer >= 2 parallel grid steps (v7x)
        smaller = [t for t in fit if B // t >= 2]
        if smaller:
            TB = max(smaller)
    grid = (B // TB,)

    need = (const_bytes + 4 * 2 * (2 * TB * D * N)
            + 4 * (3 * l2 * TB * D + l2 * TB * 2 * D))
    vmem_limit = int(min(budget, max(16 * 2 ** 20, 2 * need)))

    flops = int(2 * B * D * N * l2            # forward DFT
                + 2 * B * l2 * D * 2 * D      # per-mode channel mixing
                + 2 * B * D * l2 * N)         # inverse DFT
    bytes_accessed = int(4 * (2 * B * D * N + N * l2 + l2 * N + l2 * D * 2 * D))

    kernel = _make_factored_kernel(TB, D, l)

    out_flat = pl.pallas_call(
        kernel,
        out_shape=jax.ShapeDtypeStruct((B * D, N), jnp.float32),
        grid=grid,
        in_specs=[
            pl.BlockSpec((TB * D, N), lambda b: (b, 0)),
            pl.BlockSpec((N, l2), lambda b: (0, 0),
                         pipeline_mode=pl.Buffered(1)),
            pl.BlockSpec((l2, D, 2 * D), lambda b: (0, 0, 0),
                         pipeline_mode=pl.Buffered(1)),
            pl.BlockSpec((l2, N), lambda b: (0, 0),
                         pipeline_mode=pl.Buffered(1)),
        ],
        out_specs=pl.BlockSpec((TB * D, N), lambda b: (b, 0)),
        compiler_params=pltpu.CompilerParams(
            dimension_semantics=("parallel",),
            vmem_limit_bytes=vmem_limit),
        cost_estimate=pl.CostEstimate(
            flops=flops, transcendentals=0, bytes_accessed=bytes_accessed),
    )(x_flat, ffwd, wcat, finv)

    # Layout glue back: (B*D, N) -> (B, N, c, k).
    return jnp.transpose(out_flat.reshape(B, D, N), (0, 2, 1)).reshape(B, N, c, k)


# ----------------------------------------------------------------------------
# public entry point
# ----------------------------------------------------------------------------
def sparse_kernel_ft1d(x, weights_r, weights_i, modes1, *, path=None):
    """x: (B, N, c, k) f32 -> (B, N, c, k) f32. Matches sparseKernelFT1d.forward."""
    B, N, c, k = x.shape
    D = c * k
    l = min(modes1, N // 2 + 1)
    if path is None:
        path = "composed" if (N * D) <= 4096 else "factored"
    if path == "composed":
        return _composed_forward(x, weights_r, weights_i, l)
    return _factored_forward(x, weights_r, weights_i, l)


def _reference(x, weights_r, weights_i, modes1):
    """Pure-JAX reference mirroring the PyTorch forward exactly."""
    B, N, c, k = x.shape
    D = c * k
    M = N // 2 + 1
    l = min(modes1, M)
    xp = jnp.transpose(x.reshape(B, N, D), (0, 2, 1))              # (B, D, N)
    xf = jnp.fft.rfft(xp, axis=-1)                                 # (B, D, M)
    w = (weights_r + 1j * weights_i)[:, :, :l].astype(jnp.complex64)
    out_ft = jnp.zeros((B, D, M), dtype=jnp.complex64)
    out_ft = out_ft.at[:, :, :l].set(
        jnp.einsum('bix,iox->box', xf[:, :, :l], w))
    y = jnp.fft.irfft(out_ft, n=N, axis=-1)                        # (B, D, N)
    return jnp.transpose(y, (0, 2, 1)).reshape(B, N, c, k)


if __name__ == "__main__":
    # Module hyperparameters (shapes implied by __init__ / forward).
    k_dim = 8      # k
    c_dim = 4      # c
    alpha = 6      # modes1
    B, N = 2, 16
    D = c_dim * k_dim
    scale = 1.0 / (c_dim * k_dim * c_dim * k_dim)

    key = jax.random.PRNGKey(0)
    kx, kr, ki = jax.random.split(key, 3)

    x = jax.random.normal(kx, (B, N, c_dim, k_dim), dtype=jnp.float32)
    # torch.rand(..., dtype=cfloat): real & imag ~ U[0,1), scaled.
    weights_r = scale * jax.random.uniform(kr, (D, D, alpha), dtype=jnp.float32)
    weights_i = scale * jax.random.uniform(ki, (D, D, alpha), dtype=jnp.float32)

    ref = _reference(x, weights_r, weights_i, alpha)

    # Auto-dispatched path (composed operator at this shape).
    out = jax.block_until_ready(sparse_kernel_ft1d(x, weights_r, weights_i, alpha))
    assert out.shape == (B, N, c_dim, k_dim)
    assert jnp.allclose(out, ref, atol=2e-3, rtol=2e-3), (
        float(jnp.max(jnp.abs(out - ref))))

    # Also validate the factored (large-shape) path on the same inputs.
    out_f = jax.block_until_ready(
        sparse_kernel_ft1d(x, weights_r, weights_i, alpha, path="factored"))
    assert jnp.allclose(out_f, ref, atol=2e-3, rtol=2e-3), (
        float(jnp.max(jnp.abs(out_f - ref))))

    print("KERNEL_OK")
</pallas_src>

<mosaic_0001>
module attributes {stable_mosaic.version = 11 : i64} {
  func.func @_composed_kernel(%arg0: i32, %arg1: i32, %arg2: memref<2x512xf32, #tpu.memory_space<vmem>>, %arg3: memref<512x256xf32, #tpu.memory_space<vmem>>, %arg4: memref<2x256xf32, #tpu.memory_space<vmem>>) attributes {dimension_semantics = [#tpu.dimension_semantics<parallel>, #tpu.dimension_semantics<parallel>], iteration_bounds = array<i64: 1, 2>, scalar_prefetch = 0 : i64, scratch_operands = 0 : i64, tpu.core_type = #tpu.core_type<tc>, window_params = [{transform_indices = @transform_0, window_bounds = array<i64: 2, 512>}, {transform_indices = @transform_1, window_bounds = array<i64: 512, 256>}, {transform_indices = @transform_2, window_bounds = array<i64: 2, 256>}]} {
    %c0 = arith.constant 0 : index
    %c0_0 = arith.constant 0 : index
    %0 = vector.load %arg2[%c0, %c0_0] : memref<2x512xf32, #tpu.memory_space<vmem>>, vector<2x512xf32>
    %c0_1 = arith.constant 0 : index
    %c0_2 = arith.constant 0 : index
    %1 = vector.load %arg3[%c0_1, %c0_2] : memref<512x256xf32, #tpu.memory_space<vmem>>, vector<512x256xf32>
    %cst = arith.constant dense<0.000000e+00> : vector<2x256xf32>
    %2 = tpu.matmul %0, %1, %cst {dimension_numbers = #tpu.dot_dimension_numbers<[1], [0], [0], [1], [0, 0, 1, 1], [], []>} : vector<2x512xf32>, vector<512x256xf32>, vector<2x256xf32> -> vector<2x256xf32>
    %c0_3 = arith.constant 0 : index
    %c0_4 = arith.constant 0 : index
    %3 = vector.load %arg4[%c0_3, %c0_4] : memref<2x256xf32, #tpu.memory_space<vmem>>, vector<2x256xf32>
    tpu.vector_store %arg4[%c0_3, %c0_4], %2 {strides = array<i32>} : memref<2x256xf32, #tpu.memory_space<vmem>>, vector<2x256xf32>,
    return
  }
  func.func @transform_0(%arg0: i32, %arg1: i32) -> (i32, i32) {
    %c0_i32 = arith.constant 0 : i32
    %c0_i32_0 = arith.constant 0 : i32
    return %arg0, %c0_i32 : i32, i32
  }
  func.func @transform_1(%arg0: i32, %arg1: i32) -> (i32, i32) {
    %c0_i32 = arith.constant 0 : i32
    %c0_i32_0 = arith.constant 0 : i32
    return %c0_i32, %arg1 : i32, i32
  }
  func.func @transform_2(%arg0: i32, %arg1: i32) -> (i32, i32) {
    %c0_i32 = arith.constant 0 : i32
    return %arg0, %arg1 : i32, i32
  }
}

</mosaic_0001>

<llo_original>
// kernel: tpu_custom_call.1
$region0: #{tpu_custom_call.1}
  #allocation0 [shape = 'u32[]', space=smem, size = 0x4, offset = 0x4, fixed_abs, tag = 'smem constant byte address 0x4 - core index']
  #allocation1 [shape = 'u32[72,128]{1,0:T(1,128)}', space=vmem, size = 0x9000, scoped, tag = 'internal scratch']
  %s0 = inlined_call_operand.hbm [shape: f32[2,512], index: 0, kind: input, shape index: {}]
  %s1 = inlined_call_operand.hbm [shape: f32[512,512], index: 1, kind: input, shape index: {}]
  %s2 = inlined_call_operand.hbm [shape: f32[2,512], index: 2, kind: output, shape index: {}]
  %s3 = sld [smem:[#allocation0]]
  $region49: #{tpu_custom_call.1} parent=0
    _
  %s5 = ssub.s32 1, %s3
  %s6 = scalar_select 0, %s5, %s3
  $region1: #{tpu_custom_call.1} parent=0
    #allocation2 [shape = 'u8[4096]{0}', space=vmem, size = 0x1000, scoped, tag = 'input window, operand 0, single buffered']
    #allocation3 [shape = 's32[2]{0}', space=sflag, size = 0x8, scoped, tag = 'scoped memory for tpu_custom_call.1']
    #allocation4 [shape = 's32[2]{0}', space=sflag, size = 0x8, scoped, tag = 'scoped memory for tpu_custom_call.1']
    #allocation5 [shape = 'u8[1048576]{0}', space=vmem, size = 0x100000, scoped, tag = 'input window, operand 1']
    #allocation6 [shape = 's32[2]{0}', space=sflag, size = 0x8, scoped, tag = 'scoped memory for tpu_custom_call.1']
    #allocation7 [shape = 'u8[4096]{0}', space=vmem, size = 0x1000, scoped, tag = 'output window, operand 0']
    %7 = vsyncpa [#allocation3], 0
    %8 = vsyncpa [#allocation6], 0
    %s9 = scalar_lea.sflag [#allocation6], 1
    %10 = vsyncpa %s9, 0
    %11 = vsyncpa [#allocation4], 0
    %s12 = scalar_lea.sflag [#allocation4], 1
    %13 = vsyncpa %s12, 0
    loop: start=0, step=1, limit=4
    $region2: #{tpu_custom_call.1} parent=1 // loop_pre_header
      _
    $region3: #{tpu_custom_call.1} parent=1 // loop_header
      %s15 = sphi 0, %s19
      %p16 = scmp.ge.s32.totalorder %s15, 4
      %s22 = sphi 0, %s34
      %s23 = sphi 0, %s30
      %s24 = sphi 0, %s22
      %s25 = sphi 0, %s23
      %s26 = sphi 0, %s24
      %s27 = sphi 0, %s25
      %s37 = sphi 0, %s39
      %s40 = sphi 0, %s37
      %s41 = sphi 0, %s40
      %s57 = sphi 0, %s41
      %s63 = sphi 0, %s65
      %s66 = sphi 0, %s63
      %s67 = sphi 0, %s66
      %s83 = sphi 0, %s67
      %s91 = sphi 0, %s93
      %s94 = sphi 0, %s91
      %s95 = sphi 0, %s94
      %s111 = sphi 0, %s95
    $region4: #{tpu_custom_call.1} parent=1 // loop_header_branch
      %18 = sbr.rel (%p16) target = $region8
    $region5: #{tpu_custom_call.1} parent=1 // loop_body
      %s20 = ssub.s32 %s15, 1
      %s21 = ssub.s32 %s15, 2
      %s28 = sadd.s32 1, %s23
      %p29 = scmp.ge.s32.totalorder %s28, 2
      %s30 = scalar_select %p29, 0, %s28
      %s31 = sadd.s32 1, %s22
      %s32 = scalar_select %p29, %s31, %s22
      %p33 = scmp.ge.s32.totalorder %s32, 1
      %s34 = scalar_select %p33, 0, %s32
      %s35 = ssub.s32 %s22, %s34
      %p36 = scmp.eq.s32.totalorder %s35, 0
      %s38 = sadd.s32 %s37, 1
      %s39 = scalar_select %p36, %s37, %s38
      %p42 = pneg %p36
      %p43 = scmp.eq.s32.totalorder %s15, 1
      %p44 = por %p42, %p43
      %p45 = scmp.ne.s32.totalorder %s37, %s40
      %p46 = scmp.eq.s32.totalorder %s15, 0
      %p47 = por %p45, %p46
      %p48 = scmp.ne.s32.totalorder %s37, %s40
      %p49 = scmp.eq.s32.totalorder %s20, 1
      %p50 = por %p48, %p49
      %p51 = scmp.ne.s32.totalorder %s40, %s41
      %p52 = scmp.eq.s32.totalorder %s20, 0
      %p53 = por %p51, %p52
      %p54 = scmp.ne.s32.totalorder %s40, %s41
      %p55 = scmp.eq.s32.totalorder %s21, 1
      %p56 = por %p54, %p55
      %p58 = scmp.ne.s32.totalorder %s41, %s57
      %p59 = scmp.eq.s32.totalorder %s21, 0
      %p60 = por %p58, %p59
      %s61 = ssub.s32 %s23, %s30
      %p62 = scmp.eq.s32.totalorder %s61, 0
      %s64 = sadd.s32 %s63, 1
      %s65 = scalar_select %p62, %s63, %s64
      %p68 = pneg %p62
      %p69 = scmp.eq.s32.totalorder %s15, 1
      %p70 = por %p68, %p69
      %p71 = scmp.ne.s32.totalorder %s63, %s66
      %p72 = scmp.eq.s32.totalorder %s15, 0
      %p73 = por %p71, %p72
      %p74 = scmp.ne.s32.totalorder %s63, %s66
      %p75 = scmp.eq.s32.totalorder %s20, 1
      %p76 = por %p74, %p75
      %p77 = scmp.ne.s32.totalorder %s66, %s67
      %p78 = scmp.eq.s32.totalorder %s20, 0
      %p79 = por %p77, %p78
      %p80 = scmp.ne.s32.totalorder %s66, %s67
      %p81 = scmp.eq.s32.totalorder %s21, 1
      %p82 = por %p80, %p81
      %p84 = scmp.ne.s32.totalorder %s67, %s83
      %p85 = scmp.eq.s32.totalorder %s21, 0
      %p86 = por %p84, %p85
      %s87 = ssub.s32 %s22, %s34
      %s88 = ssub.s32 %s23, %s30
      %s89 = sor.u32 %s87, %s88
      %p90 = scmp.eq.s32.totalorder %s89, 0
      %s92 = sadd.s32 %s91, 1
      %s93 = scalar_select %p90, %s91, %s92
      %p96 = pneg %p90
      %p97 = scmp.eq.s32.totalorder %s15, 1
      %p98 = por %p96, %p97
      %p99 = scmp.ne.s32.totalorder %s91, %s94
      %p100 = scmp.eq.s32.totalorder %s15, 0
      %p101 = por %p99, %p100
      %p102 = scmp.ne.s32.totalorder %s91, %s94
      %p103 = scmp.eq.s32.totalorder %s20, 1
      %p104 = por %p102, %p103
      %p105 = scmp.ne.s32.totalorder %s94, %s95
      %p106 = scmp.eq.s32.totalorder %s20, 0
      %p107 = por %p105, %p106
      %p108 = scmp.ne.s32.totalorder %s94, %s95
      %p109 = scmp.eq.s32.totalorder %s21, 1
      %p110 = por %p108, %p109
      %p112 = scmp.ne.s32.totalorder %s95, %s111
      %p113 = scmp.eq.s32.totalorder %s21, 0
      %p114 = por %p112, %p113
      %p115 = scmp.le.s32.totalorder 1, %s15
      %p116 = scmp.lt.s32.totalorder %s15, 3
      %p117 = pnand %p115, %p116
      %p118 = pneg %p117
      // Predicated region
      $region9: #{tpu_custom_call.1} parent=5 // pred_check
        _
      $region10: #{tpu_custom_call.1} parent=5 // pred_check_branch
        %120 = sbr.rel (%p117) target = $region12
      $region11: #{tpu_custom_call.1} parent=5 // pred_region
        %s121 = ssub.s32 %s15, 1
        // Predicated region
        $region13: #{tpu_custom_call.1} parent=11 // pred_check
          %p122 = pneg %p53
        $region14: #{tpu_custom_call.1} parent=11 // pred_check_branch
          %124 = sbr.rel (%p122) target = $region16
        $region15: #{tpu_custom_call.1} parent=11 // pred_region
          %126 = vsyncadd [#allocation3], 0
          %s127 = smul.addr %s24, 4
          %s128 = smul.addr %s127, 2
          %s129 = scalar_lea.hbm %s0, %s128
          %s131 = sshll.u32 %s129, 4
          %s132 = int_to_ptr.hbm [resolvable:$true] %s131
          %s133 = sshll.u32 [#allocation2], 4
          %s134 = int_to_ptr.vmem [resolvable:$true] %s133
          %136 = dma.hbm_to_vmem [thread:$0]  %s132, 128, %s134, [#allocation3]
        $region16: #{tpu_custom_call.1} parent=11 // pred_fallthru
          _
      $region12: #{tpu_custom_call.1} parent=5 // pred_fallthru
        _
      %p137 = scmp.lt.s32.totalorder %s15, 2
      // Predicated region
      $region17: #{tpu_custom_call.1} parent=5 // pred_check
        %p138 = pneg %p137
      $region18: #{tpu_custom_call.1} parent=5 // pred_check_branch
        %140 = sbr.rel (%p138) target = $region20
      $region19: #{tpu_custom_call.1} parent=5 // pred_region
        // Predicated region
        $region21: #{tpu_custom_call.1} parent=19 // pred_check
          %p141 = pneg %p73
        $region22: #{tpu_custom_call.1} parent=19 // pred_check_branch
          %143 = sbr.rel (%p141) target = $region24
        $region23: #{tpu_custom_call.1} parent=19 // pred_region
          %s144 = sand.u32 %s63, 1
          %s145 = scalar_lea.sflag [#allocation6], %s144
          %s146 = sand.u32 %s63, 1
          %s147 = smul.addr %s146, 1024
          %s148 = scalar_lea.vmem [#allocation5], %s147
          %s149 = smul.u32 2, %s23
          %151 = vsyncadd %s145, 0
          %s152 = smul.addr %s149, 8
          %s153 = scalar_lea.hbm %s1, %s152
          %s154 = sshll.u32 %s153, 4
          %s155 = int_to_ptr.hbm [resolvable:$true] %s154
          %s156 = sshll.u32 %s148, 4
          %s157 = int_to_ptr.vmem [resolvable:$true] %s156
          %162 = dma.hbm_to_vmem [thread:$0]  %s155, 16384, %s157, %s145, 512, 256, 16
        $region24: #{tpu_custom_call.1} parent=19 // pred_fallthru
          _
      $region20: #{tpu_custom_call.1} parent=5 // pred_fallthru
        _
      %p163 = scmp.le.s32.totalorder 1, %s15
      %p164 = scmp.lt.s32.totalorder %s15, 3
      %p165 = pnand %p163, %p164
      %p166 = pneg %p165
      // Predicated region
      $region25: #{tpu_custom_call.1} parent=5 // pred_check
        _
      $region26: #{tpu_custom_call.1} parent=5 // pred_check_branch
        %168 = sbr.rel (%p165) target = $region28
      $region27: #{tpu_custom_call.1} parent=5 // pred_region
        %s169 = ssub.s32 %s15, 1
        // Predicated region
        $region29: #{tpu_custom_call.1} parent=27 // pred_check
          %p170 = pneg %p53
        $region30: #{tpu_custom_call.1} parent=27 // pred_check_branch
          %172 = sbr.rel (%p170) target = $region32
        $region31: #{tpu_custom_call.1} parent=27 // pred_region
          %174 = dma.done [#allocation3], 128
        $region32: #{tpu_custom_call.1} parent=27 // pred_fallthru
          _
        %s175 = sand.u32 %s66, 1
        %s176 = scalar_lea.sflag [#allocation6], %s175
        %s177 = sand.u32 %s66, 1
        %s178 = smul.addr %s177, 1024
        %s179 = scalar_lea.vmem [#allocation5], %s178
        // Predicated region
        $region33: #{tpu_custom_call.1} parent=27 // pred_check
          %p180 = pneg %p79
        $region34: #{tpu_custom_call.1} parent=27 // pred_check_branch
          %182 = sbr.rel (%p180) target = $region36
        $region35: #{tpu_custom_call.1} parent=27 // pred_region
          %184 = dma.done %s176, 16384
        $region36: #{tpu_custom_call.1} parent=27 // pred_fallthru
          _
        %p185 = pneg %p53
        %p186 = pneg %p50
        %s187 = sand.u32 %s66, 1
        %s188 = scalar_lea.sflag [#allocation6], %s187
        %s189 = sand.u32 %s66, 1
        %s190 = smul.addr %s189, 1024
        %s191 = scalar_lea.vmem [#allocation5], %s190
        %p192 = pneg %p79
        %p193 = pneg %p76
        %p194 = pneg %p107
        %p195 = pneg %p104
        %s196 = sand.u32 %s94, 1
        %s197 = scalar_lea.sflag [#allocation4], %s196
        %s198 = sand.u32 %s94, 1
        %s199 = smul.addr %s198, 4
        %s200 = scalar_lea.vmem [#allocation7], %s199
        %s201 = smul.u32 2, %s25
        %s202 = smul.u32 2, %s25
        %v203 = vld [vmem:[#allocation2] sm:$0xff]
        %v204 = vld [vmem:[%s179] sm:$0xff]
        %v205 = vld [vmem:[%s179 + $0x8] sm:$0xff]
        %v206 = vld [vmem:[%s179 + $0x10] sm:$0xff]
        %v207 = vld [vmem:[%s179 + $0x18] sm:$0xff]
        %v208 = vld [vmem:[%s179 + $0x20] sm:$0xff]
        %v209 = vld [vmem:[%s179 + $0x28] sm:$0xff]
        %v210 = vld [vmem:[%s179 + $0x30] sm:$0xff]
        %v211 = vld [vmem:[%s179 + $0x38] sm:$0xff]
        %v212 = vld [vmem:[%s179 + $0x40] sm:$0xff]
        %v213 = vld [vmem:[%s179 + $0x48] sm:$0xff]
        %v214 = vld [vmem:[%s179 + $0x50] sm:$0xff]
        %v215 = vld [vmem:[%s179 + $0x58] sm:$0xff]
        %v216 = vld [vmem:[%s179 + $0x60] sm:$0xff]
        %v217 = vld [vmem:[%s179 + $0x68] sm:$0xff]
        %v218 = vld [vmem:[%s179 + $0x70] sm:$0xff]
        %v219 = vld [vmem:[%s179 + $0x78] sm:$0xff]
        %v220 = vld [vmem:[%s179 + $0x80] sm:$0xff]
        %v221 = vld [vmem:[%s179 + $0x88] sm:$0xff]
        %v222 = vld [vmem:[%s179 + $0x90] sm:$0xff]
        %v223 = vld [vmem:[%s179 + $0x98] sm:$0xff]
        %v224 = vld [vmem:[%s179 + $0xa0] sm:$0xff]
        %v225 = vld [vmem:[%s179 + $0xa8] sm:$0xff]
        %v226 = vld [vmem:[%s179 + $0xb0] sm:$0xff]
        %v227 = vld [vmem:[%s179 + $0xb8] sm:$0xff]
        %v228 = vld [vmem:[%s179 + $0xc0] sm:$0xff]
        %v229 = vld [vmem:[%s179 + $0xc8] sm:$0xff]
        %v230 = vld [vmem:[%s179 + $0xd0] sm:$0xff]
        %v231 = vld [vmem:[%s179 + $0xd8] sm:$0xff]
        %v232 = vld [vmem:[%s179 + $0xe0] sm:$0xff]
        %v233 = vld [vmem:[%s179 + $0xe8] sm:$0xff]
        %v234 = vld [vmem:[%s179 + $0xf0] sm:$0xff]
        %v235 = vld [vmem:[%s179 + $0xf8] sm:$0xff]
        %v236 = vld [vmem:[%s179 + $0x100] sm:$0xff]
        %v237 = vld [vmem:[%s179 + $0x108] sm:$0xff]
        %v238 = vld [vmem:[%s179 + $0x110] sm:$0xff]
        %v239 = vld [vmem:[%s179 + $0x118] sm:$0xff]
        %v240 = vld [vmem:[%s179 + $0x120] sm:$0xff]
        %v241 = vld [vmem:[%s179 + $0x128] sm:$0xff]
        %v242 = vld [vmem:[%s179 + $0x130] sm:$0xff]
        %v243 = vld [vmem:[%s179 + $0x138] sm:$0xff]
        %v244 = vld [vmem:[%s179 + $0x140] sm:$0xff]
        %v245 = vld [vmem:[%s179 + $0x148] sm:$0xff]
        %v246 = vld [vmem:[%s179 + $0x150] sm:$0xff]
        %v247 = vld [vmem:[%s179 + $0x158] sm:$0xff]
        %v248 = vld [vmem:[%s179 + $0x160] sm:$0xff]
        %v249 = vld [vmem:[%s179 + $0x168] sm:$0xff]
        %v250 = vld [vmem:[%s179 + $0x170] sm:$0xff]
        %v251 = vld [vmem:[%s179 + $0x178] sm:$0xff]
        %v252 = vld [vmem:[%s179 + $0x180] sm:$0xff]
        %v253 = vld [vmem:[%s179 + $0x188] sm:$0xff]
        %v254 = vld [vmem:[%s179 + $0x190] sm:$0xff]
        %v255 = vld [vmem:[%s179 + $0x198] sm:$0xff]
        %v256 = vld [vmem:[%s179 + $0x1a0] sm:$0xff]
        %v257 = vld [vmem:[%s179 + $0x1a8] sm:$0xff]
        %v258 = vld [vmem:[%s179 + $0x1b0] sm:$0xff]
        %v259 = vld [vmem:[%s179 + $0x1b8] sm:$0xff]
        %v260 = vld [vmem:[%s179 + $0x1c0] sm:$0xff]
        %v261 = vld [vmem:[%s179 + $0x1c8] sm:$0xff]
        %v262 = vld [vmem:[%s179 + $0x1d0] sm:$0xff]
        %v263 = vld [vmem:[%s179 + $0x1d8] sm:$0xff]
        %v264 = vld [vmem:[%s179 + $0x1e0] sm:$0xff]
        %v265 = vld [vmem:[%s179 + $0x1e8] sm:$0xff]
        %v266 = vld [vmem:[%s179 + $0x1f0] sm:$0xff]
        %v267 = vld [vmem:[%s179 + $0x1f8] sm:$0xff]
        %v268 = vld [vmem:[%s179 + $0x200] sm:$0xff]
        %v269 = vld [vmem:[%s179 + $0x208] sm:$0xff]
        %v270 = vld [vmem:[%s179 + $0x210] sm:$0xff]
        %v271 = vld [vmem:[%s179 + $0x218] sm:$0xff]
        %v272 = vld [vmem:[%s179 + $0x220] sm:$0xff]
        %v273 = vld [vmem:[%s179 + $0x228] sm:$0xff]
        %v274 = vld [vmem:[%s179 + $0x230] sm:$0xff]
        %v275 = vld [vmem:[%s179 + $0x238] sm:$0xff]
        %v276 = vld [vmem:[%s179 + $0x240] sm:$0xff]
        %v277 = vld [vmem:[%s179 + $0x248] sm:$0xff]
        %v278 = vld [vmem:[%s179 + $0x250] sm:$0xff]
        %v279 = vld [vmem:[%s179 + $0x258] sm:$0xff]
        %v280 = vld [vmem:[%s179 + $0x260] sm:$0xff]
        %v281 = vld [vmem:[%s179 + $0x268] sm:$0xff]
        %v282 = vld [vmem:[%s179 + $0x270] sm:$0xff]
        %v283 = vld [vmem:[%s179 + $0x278] sm:$0xff]
        %v284 = vld [vmem:[%s179 + $0x280] sm:$0xff]
        %v285 = vld [vmem:[%s179 + $0x288] sm:$0xff]
        %v286 = vld [vmem:[%s179 + $0x290] sm:$0xff]
        %v287 = vld [vmem:[%s179 + $0x298] sm:$0xff]
        %v288 = vld [vmem:[%s179 + $0x2a0] sm:$0xff]
        %v289 = vld [vmem:[%s179 + $0x2a8] sm:$0xff]
        %v290 = vld [vmem:[%s179 + $0x2b0] sm:$0xff]
        %v291 = vld [vmem:[%s179 + $0x2b8] sm:$0xff]
        %v292 = vld [vmem:[%s179 + $0x2c0] sm:$0xff]
        %v293 = vld [vmem:[%s179 + $0x2c8] sm:$0xff]
        %v294 = vld [vmem:[%s179 + $0x2d0] sm:$0xff]
        %v295 = vld [vmem:[%s179 + $0x2d8] sm:$0xff]
        %v296 = vld [vmem:[%s179 + $0x2e0] sm:$0xff]
        %v297 = vld [vmem:[%s179 + $0x2e8] sm:$0xff]
        %v298 = vld [vmem:[%s179 + $0x2f0] sm:$0xff]
        %v299 = vld [vmem:[%s179 + $0x2f8] sm:$0xff]
        %v300 = vld [vmem:[%s179 + $0x300] sm:$0xff]
        %v301 = vld [vmem:[%s179 + $0x308] sm:$0xff]
        %v302 = vld [vmem:[%s179 + $0x310] sm:$0xff]
        %v303 = vld [vmem:[%s179 + $0x318] sm:$0xff]
        %v304 = vld [vmem:[%s179 + $0x320] sm:$0xff]
        %v305 = vld [vmem:[%s179 + $0x328] sm:$0xff]
        %v306 = vld [vmem:[%s179 + $0x330] sm:$0xff]
        %v307 = vld [vmem:[%s179 + $0x338] sm:$0xff]
        %v308 = vld [vmem:[%s179 + $0x340] sm:$0xff]
        %v309 = vld [vmem:[%s179 + $0x348] sm:$0xff]
        %v310 = vld [vmem:[%s179 + $0x350] sm:$0xff]
        %v311 = vld [vmem:[%s179 + $0x358] sm:$0xff]
        %v312 = vld [vmem:[%s179 + $0x360] sm:$0xff]
        %v313 = vld [vmem:[%s179 + $0x368] sm:$0xff]
        %v314 = vld [vmem:[%s179 + $0x370] sm:$0xff]
        %v315 = vld [vmem:[%s179 + $0x378] sm:$0xff]
        %v316 = vld [vmem:[%s179 + $0x380] sm:$0xff]
        %v317 = vld [vmem:[%s179 + $0x388] sm:$0xff]
        %v318 = vld [vmem:[%s179 + $0x390] sm:$0xff]
        %v319 = vld [vmem:[%s179 + $0x398] sm:$0xff]
        %v320 = vld [vmem:[%s179 + $0x3a0] sm:$0xff]
        %v321 = vld [vmem:[%s179 + $0x3a8] sm:$0xff]
        %v322 = vld [vmem:[%s179 + $0x3b0] sm:$0xff]
        %v323 = vld [vmem:[%s179 + $0x3b8] sm:$0xff]
        %v324 = vld [vmem:[%s179 + $0x3c0] sm:$0xff]
        %v325 = vld [vmem:[%s179 + $0x3c8] sm:$0xff]
        %v326 = vld [vmem:[%s179 + $0x3d0] sm:$0xff]
        %v327 = vld [vmem:[%s179 + $0x3d8] sm:$0xff]
        %v328 = vld [vmem:[%s179 + $0x3e0] sm:$0xff]
        %v329 = vld [vmem:[%s179 + $0x3e8] sm:$0xff]
        %v330 = vld [vmem:[%s179 + $0x3f0] sm:$0xff]
        %v331 = vld [vmem:[%s179 + $0x3f8] sm:$0xff]
        %333 = vst [vmem:[#allocation1] ss:$4 sm:$0xff] %v203
        %v334 = vld.sshfl [vmem:[#allocation1] sm:$0xff pattern:$0x73625140]
        %v335 = vld.sshfl [vmem:[#allocation1 + $0x8] sm:$0xff pattern:$0x73625140]
        %v336 = vld.sshfl [vmem:[#allocation1 + $0x10] sm:$0xff pattern:$0x73625140]
        %v337 = vld.sshfl [vmem:[#allocation1 + $0x18] sm:$0xff pattern:$0x73625140]
        %342 = vmatpush.msra.mxu0 %v234
        %343 = vmatpush.msra.mxu0 %v232
        %344 = vmatpush.msra.mxu0 %v230
        %345 = vmatpush.msra.mxu0 %v228
        %346 = vmatpush.msra.mxu0 %v226
        %347 = vmatpush.msra.mxu0 %v224
        %348 = vmatpush.msra.mxu0 %v222
        %349 = vmatpush.msra.mxu0 %v220
        %350 = vmatpush.msra.mxu0 %v218
        %351 = vmatpush.msra.mxu0 %v216
        %352 = vmatpush.msra.mxu0 %v214
        %353 = vmatpush.msra.mxu0 %v212
        %354 = vmatpush.msra.mxu0 %v210
        %355 = vmatpush.msra.mxu0 %v208
        %356 = vmatpush.msra.mxu0 %v206
        %357 = vmatpush.msra.mxu0 %v204
        %358 = vmatmul.f32.gmra.mxu0 %v334
        %v359 = vpop.f32.mrf.mxu0
        %v360 = vadd.f32 0.0, %v359
        %361 = vdwg.mxu0
        %362 = vmatpush.msra.mxu0 %v266
        %363 = vmatpush.msra.mxu0 %v264
        %364 = vmatpush.msra.mxu0 %v262
        %365 = vmatpush.msra.mxu0 %v260
        %366 = vmatpush.msra.mxu0 %v258
        %367 = vmatpush.msra.mxu0 %v256
        %368 = vmatpush.msra.mxu0 %v254
        %369 = vmatpush.msra.mxu0 %v252
        %370 = vmatpush.msra.mxu0 %v250
        %371 = vmatpush.msra.mxu0 %v248
        %372 = vmatpush.msra.mxu0 %v246
        %373 = vmatpush.msra.mxu0 %v244
        %374 = vmatpush.msra.mxu0 %v242
        %375 = vmatpush.msra.mxu0 %v240
        %376 = vmatpush.msra.mxu0 %v238
        %377 = vmatpush.msra.mxu0 %v236
        %378 = vmatmul.f32.gmra.mxu0 %v335
        %v379 = vpop.f32.mrf.mxu0
        %v380 = vadd.f32 %v360, %v379
        %381 = vdwg.mxu0
        %382 = vmatpush.msra.mxu0 %v298
        %383 = vmatpush.msra.mxu0 %v296
        %384 = vmatpush.msra.mxu0 %v294
        %385 = vmatpush.msra.mxu0 %v292
        %386 = vmatpush.msra.mxu0 %v290
        %387 = vmatpush.msra.mxu0 %v288
        %388 = vmatpush.msra.mxu0 %v286
        %389 = vmatpush.msra.mxu0 %v284
        %390 = vmatpush.msra.mxu0 %v282
        %391 = vmatpush.msra.mxu0 %v280
        %392 = vmatpush.msra.mxu0 %v278
        %393 = vmatpush.msra.mxu0 %v276
        %394 = vmatpush.msra.mxu0 %v274
        %395 = vmatpush.msra.mxu0 %v272
        %396 = vmatpush.msra.mxu0 %v270
        %397 = vmatpush.msra.mxu0 %v268
        %398 = vmatmul.f32.gmra.mxu0 %v336
        %v399 = vpop.f32.mrf.mxu0
        %v400 = vadd.f32 %v380, %v399
        %401 = vdwg.mxu0
        %402 = vmatpush.msra.mxu0 %v330
        %403 = vmatpush.msra.mxu0 %v328
        %404 = vmatpush.msra.mxu0 %v326
        %405 = vmatpush.msra.mxu0 %v324
        %406 = vmatpush.msra.mxu0 %v322
        %407 = vmatpush.msra.mxu0 %v320
        %408 = vmatpush.msra.mxu0 %v318
        %409 = vmatpush.msra.mxu0 %v316
        %410 = vmatpush.msra.mxu0 %v314
        %411 = vmatpush.msra.mxu0 %v312
        %412 = vmatpush.msra.mxu0 %v310
        %413 = vmatpush.msra.mxu0 %v308
        %414 = vmatpush.msra.mxu0 %v306
        %415 = vmatpush.msra.mxu0 %v304
        %416 = vmatpush.msra.mxu0 %v302
        %417 = vmatpush.msra.mxu0 %v300
        %418 = vmatmul.f32.gmra.mxu0 %v337
        %v419 = vpop.f32.mrf.mxu0
        %v420 = vadd.f32 %v400, %v419
        %421 = vdwg.mxu0
        %422 = vmatpush.msra.mxu0 %v235
        %423 = vmatpush.msra.mxu0 %v233
        %424 = vmatpush.msra.mxu0 %v231
        %425 = vmatpush.msra.mxu0 %v229
        %426 = vmatpush.msra.mxu0 %v227
        %427 = vmatpush.msra.mxu0 %v225
        %428 = vmatpush.msra.mxu0 %v223
        %429 = vmatpush.msra.mxu0 %v221
        %430 = vmatpush.msra.mxu0 %v219
        %431 = vmatpush.msra.mxu0 %v217
        %432 = vmatpush.msra.mxu0 %v215
        %433 = vmatpush.msra.mxu0 %v213
        %434 = vmatpush.msra.mxu0 %v211
        %435 = vmatpush.msra.mxu0 %v209
        %436 = vmatpush.msra.mxu0 %v207
        %437 = vmatpush.msra.mxu0 %v205
        %438 = vmatmul.f32.gmra.mxu0 %v334
        %v439 = vpop.f32.mrf.mxu0
        %v440 = vadd.f32 0.0, %v439
        %441 = vdwg.mxu0
        %442 = vmatpush.msra.mxu0 %v267
        %443 = vmatpush.msra.mxu0 %v265
        %444 = vmatpush.msra.mxu0 %v263
        %445 = vmatpush.msra.mxu0 %v261
        %446 = vmatpush.msra.mxu0 %v259
        %447 = vmatpush.msra.mxu0 %v257
        %448 = vmatpush.msra.mxu0 %v255
        %449 = vmatpush.msra.mxu0 %v253
        %450 = vmatpush.msra.mxu0 %v251
        %451 = vmatpush.msra.mxu0 %v249
        %452 = vmatpush.msra.mxu0 %v247
        %453 = vmatpush.msra.mxu0 %v245
        %454 = vmatpush.msra.mxu0 %v243
        %455 = vmatpush.msra.mxu0 %v241
        %456 = vmatpush.msra.mxu0 %v239
        %457 = vmatpush.msra.mxu0 %v237
        %458 = vmatmul.f32.gmra.mxu0 %v335
        %v459 = vpop.f32.mrf.mxu0
        %v460 = vadd.f32 %v440, %v459
        %461 = vdwg.mxu0
        %462 = vmatpush.msra.mxu0 %v299
        %463 = vmatpush.msra.mxu0 %v297
        %464 = vmatpush.msra.mxu0 %v295
        %465 = vmatpush.msra.mxu0 %v293
        %466 = vmatpush.msra.mxu0 %v291
        %467 = vmatpush.msra.mxu0 %v289
        %468 = vmatpush.msra.mxu0 %v287
        %469 = vmatpush.msra.mxu0 %v285
        %470 = vmatpush.msra.mxu0 %v283
        %471 = vmatpush.msra.mxu0 %v281
        %472 = vmatpush.msra.mxu0 %v279
        %473 = vmatpush.msra.mxu0 %v277
        %474 = vmatpush.msra.mxu0 %v275
        %475 = vmatpush.msra.mxu0 %v273
        %476 = vmatpush.msra.mxu0 %v271
        %477 = vmatpush.msra.mxu0 %v269
        %478 = vmatmul.f32.gmra.mxu0 %v336
        %v479 = vpop.f32.mrf.mxu0
        %v480 = vadd.f32 %v460, %v479
        %481 = vdwg.mxu0
        %482 = vmatpush.msra.mxu0 %v331
        %483 = vmatpush.msra.mxu0 %v329
        %484 = vmatpush.msra.mxu0 %v327
        %485 = vmatpush.msra.mxu0 %v325
        %486 = vmatpush.msra.mxu0 %v323
        %487 = vmatpush.msra.mxu0 %v321
        %488 = vmatpush.msra.mxu0 %v319
        %489 = vmatpush.msra.mxu0 %v317
        %490 = vmatpush.msra.mxu0 %v315
        %491 = vmatpush.msra.mxu0 %v313
        %492 = vmatpush.msra.mxu0 %v311
        %493 = vmatpush.msra.mxu0 %v309
        %494 = vmatpush.msra.mxu0 %v307
        %495 = vmatpush.msra.mxu0 %v305
        %496 = vmatpush.msra.mxu0 %v303
        %497 = vmatpush.msra.mxu0 %v301
        %498 = vmatmul.f32.gmra.mxu0 %v337
        %v499 = vpop.f32.mrf.mxu0
        %v500 = vadd.f32 %v480, %v499
        %501 = vdwg.mxu0
        %v504 = vrot.slane %v500, 6
        %vm505 = vcmask 1041408
        %v506 = vsel %vm505, %v420, %v504
        %508 = vst [vmem:[%s200] sm:$0xf] %v506
        %s509 = sand.u32 %s94, 1
        %s510 = scalar_lea.sflag [#allocation4], %s509
        %s511 = sand.u32 %s94, 1
        %s512 = smul.addr %s511, 4
        %s513 = scalar_lea.vmem [#allocation7], %s512
        // Predicated region
        $region37: #{tpu_custom_call.1} parent=27 // pred_check
          %p514 = pneg %p104
        $region38: #{tpu_custom_call.1} parent=27 // pred_check_branch
          %516 = sbr.rel (%p514) target = $region40
        $region39: #{tpu_custom_call.1} parent=27 // pred_region
          %s517 = smul.u32 2, %s25
          %519 = vsyncadd %s510, 0
          %s520 = smul.addr %s24, 4
          %s521 = sadd.s32 %s517, %s520
          %s522 = smul.addr %s521, 2
          %s523 = scalar_lea.hbm %s2, %s522
          %s525 = sshll.u32 %s513, 4
          %s526 = int_to_ptr.vmem [resolvable:$true] %s525
          %s527 = sshll.u32 %s523, 4
          %s528 = int_to_ptr.hbm [resolvable:$true] %s527
          %530 = dma.vmem_to_hbm [thread:$0]  %s526, 64, %s528, %s510
        $region40: #{tpu_custom_call.1} parent=27 // pred_fallthru
          _
      $region28: #{tpu_custom_call.1} parent=5 // pred_fallthru
        _
      %p531 = scmp.le.s32.totalorder 2, %s15
      // Predicated region
      $region41: #{tpu_custom_call.1} parent=5 // pred_check
        %p532 = pneg %p531
      $region42: #{tpu_custom_call.1} parent=5 // pred_check_branch
        %534 = sbr.rel (%p532) target = $region44
      $region43: #{tpu_custom_call.1} parent=5 // pred_region
        %s535 = ssub.s32 %s15, 2
        // Predicated region
        $region45: #{tpu_custom_call.1} parent=43 // pred_check
          %p536 = pneg %p110
        $region46: #{tpu_custom_call.1} parent=43 // pred_check_branch
          %538 = sbr.rel (%p536) target = $region48
        $region47: #{tpu_custom_call.1} parent=43 // pred_region
          %s539 = sand.u32 %s95, 1
          %s540 = scalar_lea.sflag [#allocation4], %s539
          %s541 = sand.u32 %s95, 1
          %s542 = smul.addr %s541, 4
          %s543 = scalar_lea.vmem [#allocation7], %s542
          %545 = dma.done %s540, 64
        $region48: #{tpu_custom_call.1} parent=43 // pred_fallthru
          _
      $region44: #{tpu_custom_call.1} parent=5 // pred_fallthru
        _
    $region6: #{tpu_custom_call.1} parent=1 // loop_footer
      %s19 = sadd.s32 1, %s15
    $region7: #{tpu_custom_call.1} parent=1 // loop_footer_branch
      %14 = sbr.rel target = $region3
    $region8: #{tpu_custom_call.1} parent=1 // loop_exit
      _
    %546 = vsyncpa [#allocation3], 1
    %s547 = scalar_lea.sflag [#allocation3], 1
    %548 = vsyncpa %s547, 1
    %549 = vsyncpa [#allocation6], 1
    %s550 = scalar_lea.sflag [#allocation6], 1
    %551 = vsyncpa %s550, 1
    %552 = vsyncpa [#allocation4], 1
    %s553 = scalar_lea.sflag [#allocation4], 1
    %554 = vsyncpa %s553, 1

</llo_original>
